<compile_context>
chip_gen: v7x
topology: tpu7x:2x2x1
jax: 0.10.0
libtpu: 0.0.40
codegen_flags: <defaults>
</compile_context>

<pallas_src>
import functools

import jax
import jax.numpy as jnp
from jax.experimental import pallas as pl
from jax.experimental.pallas import tpu as pltpu

BLOCK_SIZE = 16   # max sequence length (causal mask size)
N_EMBD = 128
NUM_HEADS = 4
HEAD_SIZE = N_EMBD // NUM_HEADS   # 32


def mha_kernel(x_ref, wqkv_ref, wp_ref, bp_ref, o_ref, cat_ref, *, num_heads):
    """One grid step = one batch element.

    x_ref   : (1, T, C)        bf16
    wqkv_ref: (C, 3*H*Dh)      bf16  (columns: [q heads | k heads | v heads],
                                      1/sqrt(Dh) pre-folded into the q columns)
    wp_ref  : (H*Dh, C)        bf16
    bp_ref  : (1, C)           f32
    o_ref   : (1, T, C)        f32
    cat_ref : (T, H*Dh)        bf16  VMEM scratch (concatenated head outputs)
    """
    x = x_ref[0]                          # (T, C) bf16
    T = x.shape[0]
    HD = wp_ref.shape[0]                  # H * Dh
    Dh = HD // num_heads

    # One wide MXU matmul for all of Q, K and V (f32 accumulation).
    qkv = jnp.dot(x, wqkv_ref[...], preferred_element_type=jnp.float32)
    qkv = qkv.astype(jnp.bfloat16)        # (T, 3*HD)

    # Causal mask as an additive bias, built once (shared by all heads).
    row = jax.lax.broadcasted_iota(jnp.int32, (T, T), 0)
    col = jax.lax.broadcasted_iota(jnp.int32, (T, T), 1)
    bias = jnp.where(row >= col, 0.0, -1e30).astype(jnp.float32)

    for h in range(num_heads):            # small & static -> unrolled
        q = qkv[:, h * Dh:(h + 1) * Dh]                     # (T, Dh), pre-scaled
        k = qkv[:, HD + h * Dh:HD + (h + 1) * Dh]           # (T, Dh)
        v = qkv[:, 2 * HD + h * Dh:2 * HD + (h + 1) * Dh]   # (T, Dh)

        # Scores without materializing k.T: contract on Dh of both operands.
        s = jax.lax.dot_general(
            q, k, dimension_numbers=(((1,), (1,)), ((), ())),
            preferred_element_type=jnp.float32)              # (T, T)
        p = jax.nn.softmax(s + bias, axis=-1)
        # attention dropout: identity in eval mode
        pv = jnp.dot(p.astype(jnp.bfloat16), v,
                     preferred_element_type=jnp.float32)     # (T, Dh)
        # Land the head output directly in the (T, H*Dh) slab (no concatenate).
        cat_ref[:, h * Dh:(h + 1) * Dh] = pv.astype(jnp.bfloat16)

    out = jnp.dot(cat_ref[...], wp_ref[...],
                  preferred_element_type=jnp.float32)        # (T, C)
    out = out + bp_ref[...]
    # proj dropout: identity in eval mode
    o_ref[0] = out.astype(o_ref.dtype)


@jax.jit
def multi_head_attention(x, wq, wk, wv, wp, bp):
    B, T, C = x.shape
    H, _, Dh = wq.shape
    HD = H * Dh
    scale = float(Dh) ** -0.5

    # Repack stacked per-head weights (H, C, Dh) -> (C, H*Dh) so the q/k/v
    # projections become a single wide matmul; fold the attention scale into Wq.
    wq2 = jnp.transpose(wq, (1, 0, 2)).reshape(C, HD) * scale
    wk2 = jnp.transpose(wk, (1, 0, 2)).reshape(C, HD)
    wv2 = jnp.transpose(wv, (1, 0, 2)).reshape(C, HD)
    wqkv = jnp.concatenate([wq2, wk2, wv2], axis=1).astype(jnp.bfloat16)

    x_bf = x.astype(jnp.bfloat16)
    wp_bf = wp.astype(jnp.bfloat16)
    bp_f32 = bp.astype(jnp.float32)

    flops = B * (2 * T * C * 3 * HD          # fused QKV projection
                 + H * 4 * T * T * Dh        # scores + PV per head
                 + 2 * T * HD * C)           # output projection
    bytes_accessed = (B * T * C * 2          # x (bf16)
                      + C * 3 * HD * 2       # fused Wqkv (bf16)
                      + HD * C * 2           # proj weight (bf16)
                      + C * 4                # proj bias (f32)
                      + B * T * C * 4)       # output (f32)
    cost = pl.CostEstimate(flops=flops,
                           transcendentals=B * H * T * T,
                           bytes_accessed=bytes_accessed)

    kernel = functools.partial(mha_kernel, num_heads=H)
    return pl.pallas_call(
        kernel,
        out_shape=jax.ShapeDtypeStruct((B, T, C), x.dtype),
        grid_spec=pltpu.PrefetchScalarGridSpec(
            num_scalar_prefetch=0,
            grid=(B,),
            in_specs=[
                pl.BlockSpec((1, T, C), lambda b: (b, 0, 0)),      # x
                # grid-invariant weights (constant index_map -> fetched once)
                pl.BlockSpec((C, 3 * HD), lambda b: (0, 0)),       # fused Wqkv
                pl.BlockSpec((HD, C), lambda b: (0, 0)),           # proj weight
                pl.BlockSpec((1, C), lambda b: (0, 0)),            # proj bias
            ],
            out_specs=pl.BlockSpec((1, T, C), lambda b: (b, 0, 0)),
            scratch_shapes=[pltpu.VMEM((T, HD), jnp.bfloat16)],
        ),
        compiler_params=pltpu.CompilerParams(
            dimension_semantics=("parallel",)),   # v7x: one batch element per TC
        cost_estimate=cost,
    )(x_bf, wqkv, wp_bf, bp_f32)


def reference_mha(x, wq, wk, wv, wp, bp):
    """Pure-JAX f32 reference mirroring the PyTorch forward (eval mode)."""
    B, T, C = x.shape
    H, _, Dh = wq.shape
    scale = float(Dh) ** -0.5
    causal = jnp.tril(jnp.ones((T, T), dtype=bool))
    outs = []
    for h in range(H):
        q = x @ wq[h]
        k = x @ wk[h]
        v = x @ wv[h]
        wei = (q @ jnp.swapaxes(k, -1, -2)) * scale
        wei = jnp.where(causal, wei, -jnp.inf)
        wei = jax.nn.softmax(wei, axis=-1)
        outs.append(wei @ v)
    cat = jnp.concatenate(outs, axis=-1)
    return cat @ wp + bp


if __name__ == "__main__":
    key = jax.random.PRNGKey(0)
    k_x, k_q, k_k, k_v, k_p, k_b = jax.random.split(key, 6)

    B, T, C = 2, BLOCK_SIZE, N_EMBD     # (2, 16, 128)
    H, Dh = NUM_HEADS, HEAD_SIZE

    x  = jax.random.normal(k_x, (B, T, C), dtype=jnp.float32)
    # deterministic synthetic weights (shapes from the module __init__)
    wq = jax.random.normal(k_q, (H, C, Dh), dtype=jnp.float32) * 0.02
    wk = jax.random.normal(k_k, (H, C, Dh), dtype=jnp.float32) * 0.02
    wv = jax.random.normal(k_v, (H, C, Dh), dtype=jnp.float32) * 0.02
    wp = jax.random.normal(k_p, (H * Dh, C), dtype=jnp.float32) * 0.02
    bp = jax.random.normal(k_b, (1, C), dtype=jnp.float32) * 0.02

    out = multi_head_attention(x, wq, wk, wv, wp, bp)
    out = jax.block_until_ready(out)

    ref = reference_mha(x, wq, wk, wv, wp, bp)
    assert out.shape == (B, T, C)
    # bf16 MXU inputs -> relaxed tolerance vs the f32 reference
    assert jnp.allclose(out, ref, atol=2e-2, rtol=2e-2), "mismatch vs reference"

    print("KERNEL_OK")
</pallas_src>

<mosaic_0001>
module attributes {stable_mosaic.version = 11 : i64} {
  func.func @mha_kernel(%arg0: i32, %arg1: memref<1x16x128xbf16, #tpu.memory_space<vmem>>, %arg2: memref<128x384xbf16, #tpu.memory_space<vmem>>, %arg3: memref<128x128xbf16, #tpu.memory_space<vmem>>, %arg4: memref<1x128xf32, #tpu.memory_space<vmem>>, %arg5: memref<1x16x128xf32, #tpu.memory_space<vmem>>, %arg6: memref<16x128xbf16, #tpu.memory_space<vmem>>) attributes {dimension_semantics = [#tpu.dimension_semantics<parallel>], iteration_bounds = array<i64: 2>, scalar_prefetch = 0 : i64, scratch_operands = 1 : i64, tpu.core_type = #tpu.core_type<tc>, window_params = [{transform_indices = @transform_0, window_bounds = array<i64: 1, 16, 128>}, {pipeline_mode = #tpu.pipeline_mode<synchronous>, transform_indices = @transform_1, window_bounds = array<i64: 128, 384>}, {pipeline_mode = #tpu.pipeline_mode<synchronous>, transform_indices = @transform_2, window_bounds = array<i64: 128, 128>}, {pipeline_mode = #tpu.pipeline_mode<synchronous>, transform_indices = @transform_3, window_bounds = array<i64: 1, 128>}, {transform_indices = @transform_4, window_bounds = array<i64: 1, 16, 128>}]} {
    %c0 = arith.constant 0 : index
    %c0_0 = arith.constant 0 : index
    %c0_1 = arith.constant 0 : index
    %0 = vector.load %arg1[%c0, %c0_0, %c0_1] : memref<1x16x128xbf16, #tpu.memory_space<vmem>>, vector<1x16x128xbf16>
    %1 = vector.shape_cast %0 : vector<1x16x128xbf16> to vector<16x128xbf16>
    %c0_2 = arith.constant 0 : index
    %c0_3 = arith.constant 0 : index
    %2 = vector.load %arg2[%c0_2, %c0_3] : memref<128x384xbf16, #tpu.memory_space<vmem>>, vector<128x384xbf16>
    %cst = arith.constant dense<0.000000e+00> : vector<16x384xf32>
    %3 = tpu.matmul %1, %2, %cst {dimension_numbers = #tpu.dot_dimension_numbers<[1], [0], [0], [1], [0, 0, 1, 1], [], []>} : vector<16x128xbf16>, vector<128x384xbf16>, vector<16x384xf32> -> vector<16x384xf32>
    %4 = arith.truncf %3 : vector<16x384xf32> to vector<16x384xbf16>
    %5 = tpu.iota {dimensions = array<i32: 0>} : vector<16x16xi32>
    %6 = tpu.iota {dimensions = array<i32: 1>} : vector<16x16xi32>
    %7 = arith.cmpi sge, %5, %6 : vector<16x16xi32>
    %cst_4 = arith.constant 0.000000e+00 : f32
    %cst_5 = arith.constant -1.000000e+30 : f32
    %8 = vector.broadcast %cst_4 : f32 to vector<16x16xf32>
    %9 = vector.broadcast %cst_5 : f32 to vector<16x16xf32>
    %10 = arith.select %7, %8, %9 : vector<16x16xi1>, vector<16x16xf32>
    %11 = vector.extract_strided_slice %4 {offsets = [0, 0], sizes = [16, 32], strides = [1, 1]} : vector<16x384xbf16> to vector<16x32xbf16>
    %12 = vector.extract_strided_slice %4 {offsets = [0, 128], sizes = [16, 32], strides = [1, 1]} : vector<16x384xbf16> to vector<16x32xbf16>
    %13 = vector.extract_strided_slice %4 {offsets = [0, 256], sizes = [16, 32], strides = [1, 1]} : vector<16x384xbf16> to vector<16x32xbf16>
    %cst_6 = arith.constant dense<0.000000e+00> : vector<16x16xf32>
    %14 = tpu.matmul %11, %12, %cst_6 {dimension_numbers = #tpu.dot_dimension_numbers<[1], [1], [0], [0], [0, 0, 1, 0], [], []>} : vector<16x32xbf16>, vector<16x32xbf16>, vector<16x16xf32> -> vector<16x16xf32>
    %15 = arith.addf %14, %10 : vector<16x16xf32>
    %cst_7 = arith.constant dense<0xFF800000> : vector<16xf32>
    %16 = vector.multi_reduction <maximumf>, %15, %cst_7 [1] : vector<16x16xf32> to vector<16xf32>
    %cst_8 = arith.constant 0xFF800000 : f32
    %17 = vector.broadcast %cst_8 : f32 to vector<16xf32>
    %18 = arith.maximumf %17, %16 : vector<16xf32>
    %19 = vector.shape_cast %18 : vector<16xf32> to vector<16x1xf32>
    %20 = vector.broadcast %19 : vector<16x1xf32> to vector<16x16xf32>
    %21 = arith.subf %15, %20 : vector<16x16xf32>
    %22 = math.exp %21 : vector<16x16xf32>
    %cst_9 = arith.constant dense<0.000000e+00> : vector<16xf32>
    %23 = vector.multi_reduction <add>, %22, %cst_9 [1] : vector<16x16xf32> to vector<16xf32>
    %24 = vector.shape_cast %23 : vector<16xf32> to vector<16x1xf32>
    %25 = vector.broadcast %24 : vector<16x1xf32> to vector<16x16xf32>
    %26 = arith.divf %22, %25 : vector<16x16xf32>
    %27 = arith.truncf %26 : vector<16x16xf32> to vector<16x16xbf16>
    %cst_10 = arith.constant dense<0.000000e+00> : vector<16x32xf32>
    %28 = tpu.matmul %27, %13, %cst_10 {dimension_numbers = #tpu.dot_dimension_numbers<[1], [0], [0], [1], [0, 0, 1, 1], [], []>} : vector<16x16xbf16>, vector<16x32xbf16>, vector<16x32xf32> -> vector<16x32xf32>
    %29 = arith.truncf %28 : vector<16x32xf32> to vector<16x32xbf16>
    %c0_11 = arith.constant 0 : index
    %c0_12 = arith.constant 0 : index
    %30 = vector.load %arg6[%c0_11, %c0_12] : memref<16x128xbf16, #tpu.memory_space<vmem>>, vector<16x32xbf16>
    tpu.vector_store %arg6[%c0_11, %c0_12], %29 {strides = array<i32>} : memref<16x128xbf16, #tpu.memory_space<vmem>>, vector<16x32xbf16>,
    %31 = vector.extract_strided_slice %4 {offsets = [0, 32], sizes = [16, 32], strides = [1, 1]} : vector<16x384xbf16> to vector<16x32xbf16>
    %32 = vector.extract_strided_slice %4 {offsets = [0, 160], sizes = [16, 32], strides = [1, 1]} : vector<16x384xbf16> to vector<16x32xbf16>
    %33 = vector.extract_strided_slice %4 {offsets = [0, 288], sizes = [16, 32], strides = [1, 1]} : vector<16x384xbf16> to vector<16x32xbf16>
    %cst_13 = arith.constant dense<0.000000e+00> : vector<16x16xf32>
    %34 = tpu.matmul %31, %32, %cst_13 {dimension_numbers = #tpu.dot_dimension_numbers<[1], [1], [0], [0], [0, 0, 1, 0], [], []>} : vector<16x32xbf16>, vector<16x32xbf16>, vector<16x16xf32> -> vector<16x16xf32>
    %35 = arith.addf %34, %10 : vector<16x16xf32>
    %cst_14 = arith.constant dense<0xFF800000> : vector<16xf32>
    %36 = vector.multi_reduction <maximumf>, %35, %cst_14 [1] : vector<16x16xf32> to vector<16xf32>
    %cst_15 = arith.constant 0xFF800000 : f32
    %37 = vector.broadcast %cst_15 : f32 to vector<16xf32>
    %38 = arith.maximumf %37, %36 : vector<16xf32>
    %39 = vector.shape_cast %38 : vector<16xf32> to vector<16x1xf32>
    %40 = vector.broadcast %39 : vector<16x1xf32> to vector<16x16xf32>
    %41 = arith.subf %35, %40 : vector<16x16xf32>
    %42 = math.exp %41 : vector<16x16xf32>
    %cst_16 = arith.constant dense<0.000000e+00> : vector<16xf32>
    %43 = vector.multi_reduction <add>, %42, %cst_16 [1] : vector<16x16xf32> to vector<16xf32>
    %44 = vector.shape_cast %43 : vector<16xf32> to vector<16x1xf32>
    %45 = vector.broadcast %44 : vector<16x1xf32> to vector<16x16xf32>
    %46 = arith.divf %42, %45 : vector<16x16xf32>
    %47 = arith.truncf %46 : vector<16x16xf32> to vector<16x16xbf16>
    %cst_17 = arith.constant dense<0.000000e+00> : vector<16x32xf32>
    %48 = tpu.matmul %47, %33, %cst_17 {dimension_numbers = #tpu.dot_dimension_numbers<[1], [0], [0], [1], [0, 0, 1, 1], [], []>} : vector<16x16xbf16>, vector<16x32xbf16>, vector<16x32xf32> -> vector<16x32xf32>
    %49 = arith.truncf %48 : vector<16x32xf32> to vector<16x32xbf16>
    %c0_18 = arith.constant 0 : index
    %c32 = arith.constant 32 : index
    %50 = vector.load %arg6[%c0_18, %c32] : memref<16x128xbf16, #tpu.memory_space<vmem>>, vector<16x32xbf16>
    tpu.vector_store %arg6[%c0_18, %c32], %49 {strides = array<i32>} : memref<16x128xbf16, #tpu.memory_space<vmem>>, vector<16x32xbf16>,
    %51 = vector.extract_strided_slice %4 {offsets = [0, 64], sizes = [16, 32], strides = [1, 1]} : vector<16x384xbf16> to vector<16x32xbf16>
    %52 = vector.extract_strided_slice %4 {offsets = [0, 192], sizes = [16, 32], strides = [1, 1]} : vector<16x384xbf16> to vector<16x32xbf16>
    %53 = vector.extract_strided_slice %4 {offsets = [0, 320], sizes = [16, 32], strides = [1, 1]} : vector<16x384xbf16> to vector<16x32xbf16>
    %cst_19 = arith.constant dense<0.000000e+00> : vector<16x16xf32>
    %54 = tpu.matmul %51, %52, %cst_19 {dimension_numbers = #tpu.dot_dimension_numbers<[1], [1], [0], [0], [0, 0, 1, 0], [], []>} : vector<16x32xbf16>, vector<16x32xbf16>, vector<16x16xf32> -> vector<16x16xf32>
    %55 = arith.addf %54, %10 : vector<16x16xf32>
    %cst_20 = arith.constant dense<0xFF800000> : vector<16xf32>
    %56 = vector.multi_reduction <maximumf>, %55, %cst_20 [1] : vector<16x16xf32> to vector<16xf32>
    %cst_21 = arith.constant 0xFF800000 : f32
    %57 = vector.broadcast %cst_21 : f32 to vector<16xf32>
    %58 = arith.maximumf %57, %56 : vector<16xf32>
    %59 = vector.shape_cast %58 : vector<16xf32> to vector<16x1xf32>
    %60 = vector.broadcast %59 : vector<16x1xf32> to vector<16x16xf32>
    %61 = arith.subf %55, %60 : vector<16x16xf32>
    %62 = math.exp %61 : vector<16x16xf32>
    %cst_22 = arith.constant dense<0.000000e+00> : vector<16xf32>
    %63 = vector.multi_reduction <add>, %62, %cst_22 [1] : vector<16x16xf32> to vector<16xf32>
    %64 = vector.shape_cast %63 : vector<16xf32> to vector<16x1xf32>
    %65 = vector.broadcast %64 : vector<16x1xf32> to vector<16x16xf32>
    %66 = arith.divf %62, %65 : vector<16x16xf32>
    %67 = arith.truncf %66 : vector<16x16xf32> to vector<16x16xbf16>
    %cst_23 = arith.constant dense<0.000000e+00> : vector<16x32xf32>
    %68 = tpu.matmul %67, %53, %cst_23 {dimension_numbers = #tpu.dot_dimension_numbers<[1], [0], [0], [1], [0, 0, 1, 1], [], []>} : vector<16x16xbf16>, vector<16x32xbf16>, vector<16x32xf32> -> vector<16x32xf32>
    %69 = arith.truncf %68 : vector<16x32xf32> to vector<16x32xbf16>
    %c0_24 = arith.constant 0 : index
    %c64 = arith.constant 64 : index
    %70 = vector.load %arg6[%c0_24, %c64] : memref<16x128xbf16, #tpu.memory_space<vmem>>, vector<16x32xbf16>
    tpu.vector_store %arg6[%c0_24, %c64], %69 {strides = array<i32>} : memref<16x128xbf16, #tpu.memory_space<vmem>>, vector<16x32xbf16>,
    %71 = vector.extract_strided_slice %4 {offsets = [0, 96], sizes = [16, 32], strides = [1, 1]} : vector<16x384xbf16> to vector<16x32xbf16>
    %72 = vector.extract_strided_slice %4 {offsets = [0, 224], sizes = [16, 32], strides = [1, 1]} : vector<16x384xbf16> to vector<16x32xbf16>
    %73 = vector.extract_strided_slice %4 {offsets = [0, 352], sizes = [16, 32], strides = [1, 1]} : vector<16x384xbf16> to vector<16x32xbf16>
    %cst_25 = arith.constant dense<0.000000e+00> : vector<16x16xf32>
    %74 = tpu.matmul %71, %72, %cst_25 {dimension_numbers = #tpu.dot_dimension_numbers<[1], [1], [0], [0], [0, 0, 1, 0], [], []>} : vector<16x32xbf16>, vector<16x32xbf16>, vector<16x16xf32> -> vector<16x16xf32>
    %75 = arith.addf %74, %10 : vector<16x16xf32>
    %cst_26 = arith.constant dense<0xFF800000> : vector<16xf32>
    %76 = vector.multi_reduction <maximumf>, %75, %cst_26 [1] : vector<16x16xf32> to vector<16xf32>
    %cst_27 = arith.constant 0xFF800000 : f32
    %77 = vector.broadcast %cst_27 : f32 to vector<16xf32>
    %78 = arith.maximumf %77, %76 : vector<16xf32>
    %79 = vector.shape_cast %78 : vector<16xf32> to vector<16x1xf32>
    %80 = vector.broadcast %79 : vector<16x1xf32> to vector<16x16xf32>
    %81 = arith.subf %75, %80 : vector<16x16xf32>
    %82 = math.exp %81 : vector<16x16xf32>
    %cst_28 = arith.constant dense<0.000000e+00> : vector<16xf32>
    %83 = vector.multi_reduction <add>, %82, %cst_28 [1] : vector<16x16xf32> to vector<16xf32>
    %84 = vector.shape_cast %83 : vector<16xf32> to vector<16x1xf32>
    %85 = vector.broadcast %84 : vector<16x1xf32> to vector<16x16xf32>
    %86 = arith.divf %82, %85 : vector<16x16xf32>
    %87 = arith.truncf %86 : vector<16x16xf32> to vector<16x16xbf16>
    %cst_29 = arith.constant dense<0.000000e+00> : vector<16x32xf32>
    %88 = tpu.matmul %87, %73, %cst_29 {dimension_numbers = #tpu.dot_dimension_numbers<[1], [0], [0], [1], [0, 0, 1, 1], [], []>} : vector<16x16xbf16>, vector<16x32xbf16>, vector<16x32xf32> -> vector<16x32xf32>
    %89 = arith.truncf %88 : vector<16x32xf32> to vector<16x32xbf16>
    %c0_30 = arith.constant 0 : index
    %c96 = arith.constant 96 : index
    %90 = vector.load %arg6[%c0_30, %c96] : memref<16x128xbf16, #tpu.memory_space<vmem>>, vector<16x32xbf16>
    tpu.vector_store %arg6[%c0_30, %c96], %89 {strides = array<i32>} : memref<16x128xbf16, #tpu.memory_space<vmem>>, vector<16x32xbf16>,
    %c0_31 = arith.constant 0 : index
    %c0_32 = arith.constant 0 : index
    %91 = vector.load %arg6[%c0_31, %c0_32] : memref<16x128xbf16, #tpu.memory_space<vmem>>, vector<16x128xbf16>
    %c0_33 = arith.constant 0 : index
    %c0_34 = arith.constant 0 : index
    %92 = vector.load %arg3[%c0_33, %c0_34] : memref<128x128xbf16, #tpu.memory_space<vmem>>, vector<128x128xbf16>
    %cst_35 = arith.constant dense<0.000000e+00> : vector<16x128xf32>
    %93 = tpu.matmul %91, %92, %cst_35 {dimension_numbers = #tpu.dot_dimension_numbers<[1], [0], [0], [1], [0, 0, 1, 1], [], []>} : vector<16x128xbf16>, vector<128x128xbf16>, vector<16x128xf32> -> vector<16x128xf32>
    %c0_36 = arith.constant 0 : index
    %c0_37 = arith.constant 0 : index
    %94 = vector.load %arg4[%c0_36, %c0_37] : memref<1x128xf32, #tpu.memory_space<vmem>>, vector<1x128xf32>
    %95 = vector.broadcast %94 : vector<1x128xf32> to vector<16x128xf32>
    %96 = arith.addf %93, %95 : vector<16x128xf32>
    %c0_38 = arith.constant 0 : index
    %c0_39 = arith.constant 0 : index
    %c0_40 = arith.constant 0 : index
    %97 = vector.load %arg5[%c0_38, %c0_39, %c0_40] : memref<1x16x128xf32, #tpu.memory_space<vmem>>, vector<1x16x128xf32>
    %98 = vector.shape_cast %97 : vector<1x16x128xf32> to vector<16x128xf32>
    %99 = vector.shape_cast %96 : vector<16x128xf32> to vector<1x16x128xf32>
    tpu.vector_store %arg5[%c0_38, %c0_39, %c0_40], %99 {strides = array<i32>} : memref<1x16x128xf32, #tpu.memory_space<vmem>>, vector<1x16x128xf32>,
    return
  }
  func.func @transform_0(%arg0: i32) -> (i32, i32, i32) {
    %c0_i32 = arith.constant 0 : i32
    %c0_i32_0 = arith.constant 0 : i32
    %c0_i32_1 = arith.constant 0 : i32
    return %arg0, %c0_i32, %c0_i32_0 : i32, i32, i32
  }
  func.func @transform_1(%arg0: i32) -> (i32, i32) {
    %c0_i32 = arith.constant 0 : i32
    %c0_i32_0 = arith.constant 0 : i32
    %c0_i32_1 = arith.constant 0 : i32
    return %c0_i32, %c0_i32_0 : i32, i32
  }
  func.func @transform_2(%arg0: i32) -> (i32, i32) {
    %c0_i32 = arith.constant 0 : i32
    %c0_i32_0 = arith.constant 0 : i32
    %c0_i32_1 = arith.constant 0 : i32
    return %c0_i32, %c0_i32_0 : i32, i32
  }
  func.func @transform_3(%arg0: i32) -> (i32, i32) {
    %c0_i32 = arith.constant 0 : i32
    %c0_i32_0 = arith.constant 0 : i32
    %c0_i32_1 = arith.constant 0 : i32
    return %c0_i32, %c0_i32_0 : i32, i32
  }
  func.func @transform_4(%arg0: i32) -> (i32, i32, i32) {
    %c0_i32 = arith.constant 0 : i32
    %c0_i32_0 = arith.constant 0 : i32
    %c0_i32_1 = arith.constant 0 : i32
    return %arg0, %c0_i32, %c0_i32_0 : i32, i32, i32
  }
}

</mosaic_0001>

<llo_original>
// kernel: multi_head_attention.1
$region0: #{multi_head_attention.1}
  #allocation0 [shape = 'u32[]', space=smem, size = 0x4, offset = 0x4, fixed_abs, tag = 'smem constant byte address 0x4 - core index']
  #allocation1 [shape = 'u32[144,128]{1,0:T(1,128)}', space=vmem, size = 0x12000, scoped, tag = 'internal scratch']
  #allocation2 [shape = 'bf16[16,128]{1,0:T(16,128)(2,1)}', space=vmem, size = 0x1000, scoped, tag = 'scratch operand']
  %s0 = inlined_call_operand.vmem [shape: bf16[2,16,128], index: 0, kind: input, shape index: {}]
  %s1 = inlined_call_operand.vmem [shape: bf16[128,384], index: 1, kind: input, shape index: {}]
  %s2 = inlined_call_operand.vmem [shape: bf16[128,128], index: 2, kind: input, shape index: {}]
  %s3 = inlined_call_operand.vmem [shape: f32[1,128], index: 3, kind: input, shape index: {}]
  %s4 = inlined_call_operand.hbm [shape: f32[2,16,128], index: 4, kind: output, shape index: {}]
  %s5 = sld [smem:[#allocation0]]
  $region49: #{multi_head_attention.1} parent=0
    _
  %s7 = ssub.s32 1, %s5
  %s8 = scalar_select 0, %s7, %s5
  $region1: #{multi_head_attention.1} parent=0
    #allocation3 [shape = 'u8[16384]{0}', space=vmem, size = 0x4000, scoped, tag = 'output window, operand 0']
    #allocation4 [shape = 's32[2]{0}', space=sflag, size = 0x8, scoped, tag = 'scoped memory for multi_head_attention.1']
    %9 = vsyncpa [#allocation4], 0
    %s10 = scalar_lea.sflag [#allocation4], 1
    %11 = vsyncpa %s10, 0
    loop: start=0, step=1, limit=4
    $region2: #{multi_head_attention.1} parent=1 // loop_pre_header
      _
    $region3: #{multi_head_attention.1} parent=1 // loop_header
      %s13 = sphi 0, %s17
      %p14 = scmp.ge.s32.totalorder %s13, 4
      %s23 = sphi 0, %s25
      %s26 = sphi 0, %s23
      %s27 = sphi 0, %s26
      %s43 = sphi 0, %s27
      %s47 = sphi 0, %s47
      %s49 = sphi 0, %s47
      %s50 = sphi 0, %s49
      %s64 = sphi 0, %s50
      %s68 = sphi 0, %s68
      %s70 = sphi 0, %s68
      %s71 = sphi 0, %s70
      %s85 = sphi 0, %s71
      %s89 = sphi 0, %s89
      %s91 = sphi 0, %s89
      %s92 = sphi 0, %s91
      %s106 = sphi 0, %s92
      %s112 = sphi 0, %s114
      %s115 = sphi 0, %s112
      %s116 = sphi 0, %s115
      %s132 = sphi 0, %s116
    $region4: #{multi_head_attention.1} parent=1 // loop_header_branch
      %16 = sbr.rel (%p14) target = $region8
    $region5: #{multi_head_attention.1} parent=1 // loop_body
      %s18 = ssub.s32 %s13, 1
      %s19 = ssub.s32 %s13, 2
      %s20 = sadd.s32 %s13, 1
      %s21 = ssub.s32 %s13, %s20
      %p22 = scmp.eq.s32.totalorder %s21, 0
      %s24 = sadd.s32 %s23, 1
      %s25 = scalar_select %p22, %s23, %s24
      %p28 = pneg %p22
      %p29 = scmp.eq.s32.totalorder %s13, 1
      %p30 = por %p28, %p29
      %p31 = scmp.ne.s32.totalorder %s23, %s26
      %p32 = scmp.eq.s32.totalorder %s13, 0
      %p33 = por %p31, %p32
      %p34 = scmp.ne.s32.totalorder %s23, %s26
      %p35 = scmp.eq.s32.totalorder %s18, 1
      %p36 = por %p34, %p35
      %p37 = scmp.ne.s32.totalorder %s26, %s27
      %p38 = scmp.eq.s32.totalorder %s18, 0
      %p39 = por %p37, %p38
      %p40 = scmp.ne.s32.totalorder %s26, %s27
      %p41 = scmp.eq.s32.totalorder %s19, 1
      %p42 = por %p40, %p41
      %p44 = scmp.ne.s32.totalorder %s27, %s43
      %p45 = scmp.eq.s32.totalorder %s19, 0
      %p46 = por %p44, %p45
      %s48 = sadd.s32 %s47, 1
      %p51 = scmp.eq.s32.totalorder %s13, 1
      %p52 = scmp.ne.s32.totalorder %s47, %s49
      %p53 = scmp.eq.s32.totalorder %s13, 0
      %p54 = por %p52, %p53
      %p55 = scmp.ne.s32.totalorder %s47, %s49
      %p56 = scmp.eq.s32.totalorder %s18, 1
      %p57 = por %p55, %p56
      %p58 = scmp.ne.s32.totalorder %s49, %s50
      %p59 = scmp.eq.s32.totalorder %s18, 0
      %p60 = por %p58, %p59
      %p61 = scmp.ne.s32.totalorder %s49, %s50
      %p62 = scmp.eq.s32.totalorder %s19, 1
      %p63 = por %p61, %p62
      %p65 = scmp.ne.s32.totalorder %s50, %s64
      %p66 = scmp.eq.s32.totalorder %s19, 0
      %p67 = por %p65, %p66
      %s69 = sadd.s32 %s68, 1
      %p72 = scmp.eq.s32.totalorder %s13, 1
      %p73 = scmp.ne.s32.totalorder %s68, %s70
      %p74 = scmp.eq.s32.totalorder %s13, 0
      %p75 = por %p73, %p74
      %p76 = scmp.ne.s32.totalorder %s68, %s70
      %p77 = scmp.eq.s32.totalorder %s18, 1
      %p78 = por %p76, %p77
      %p79 = scmp.ne.s32.totalorder %s70, %s71
      %p80 = scmp.eq.s32.totalorder %s18, 0
      %p81 = por %p79, %p80
      %p82 = scmp.ne.s32.totalorder %s70, %s71
      %p83 = scmp.eq.s32.totalorder %s19, 1
      %p84 = por %p82, %p83
      %p86 = scmp.ne.s32.totalorder %s71, %s85
      %p87 = scmp.eq.s32.totalorder %s19, 0
      %p88 = por %p86, %p87
      %s90 = sadd.s32 %s89, 1
      %p93 = scmp.eq.s32.totalorder %s13, 1
      %p94 = scmp.ne.s32.totalorder %s89, %s91
      %p95 = scmp.eq.s32.totalorder %s13, 0
      %p96 = por %p94, %p95
      %p97 = scmp.ne.s32.totalorder %s89, %s91
      %p98 = scmp.eq.s32.totalorder %s18, 1
      %p99 = por %p97, %p98
      %p100 = scmp.ne.s32.totalorder %s91, %s92
      %p101 = scmp.eq.s32.totalorder %s18, 0
      %p102 = por %p100, %p101
      %p103 = scmp.ne.s32.totalorder %s91, %s92
      %p104 = scmp.eq.s32.totalorder %s19, 1
      %p105 = por %p103, %p104
      %p107 = scmp.ne.s32.totalorder %s92, %s106
      %p108 = scmp.eq.s32.totalorder %s19, 0
      %p109 = por %p107, %p108
      %s110 = ssub.s32 %s13, %s20
      %p111 = scmp.eq.s32.totalorder %s110, 0
      %s113 = sadd.s32 %s112, 1
      %s114 = scalar_select %p111, %s112, %s113
      %p117 = pneg %p111
      %p118 = scmp.eq.s32.totalorder %s13, 1
      %p119 = por %p117, %p118
      %p120 = scmp.ne.s32.totalorder %s112, %s115
      %p121 = scmp.eq.s32.totalorder %s13, 0
      %p122 = por %p120, %p121
      %p123 = scmp.ne.s32.totalorder %s112, %s115
      %p124 = scmp.eq.s32.totalorder %s18, 1
      %p125 = por %p123, %p124
      %p126 = scmp.ne.s32.totalorder %s115, %s116
      %p127 = scmp.eq.s32.totalorder %s18, 0
      %p128 = por %p126, %p127
      %p129 = scmp.ne.s32.totalorder %s115, %s116
      %p130 = scmp.eq.s32.totalorder %s19, 1
      %p131 = por %p129, %p130
      %p133 = scmp.ne.s32.totalorder %s116, %s132
      %p134 = scmp.eq.s32.totalorder %s19, 0
      %p135 = por %p133, %p134
      %p136 = scmp.le.s32.totalorder 1, %s13
      %p137 = scmp.lt.s32.totalorder %s13, 3
      %p138 = pnand %p136, %p137
      %p139 = pneg %p138
      // Predicated region
      $region9: #{multi_head_attention.1} parent=5 // pred_check
        _
      $region10: #{multi_head_attention.1} parent=5 // pred_check_branch
        %141 = sbr.rel (%p138) target = $region12
      $region11: #{multi_head_attention.1} parent=5 // pred_region
        %s142 = ssub.s32 %s13, 1
        // Predicated region
        $region13: #{multi_head_attention.1} parent=11 // pred_check
          %p143 = pneg %p60
        $region14: #{multi_head_attention.1} parent=11 // pred_check_branch
          %145 = sbr.rel (%p143) target = $region16
        $region15: #{multi_head_attention.1} parent=11 // pred_region
          _
        $region16: #{multi_head_attention.1} parent=11 // pred_fallthru
          _
        // Predicated region
        $region17: #{multi_head_attention.1} parent=11 // pred_check
          %p146 = pneg %p81
        $region18: #{multi_head_attention.1} parent=11 // pred_check_branch
          %148 = sbr.rel (%p146) target = $region20
        $region19: #{multi_head_attention.1} parent=11 // pred_region
          _
        $region20: #{multi_head_attention.1} parent=11 // pred_fallthru
          _
        // Predicated region
        $region21: #{multi_head_attention.1} parent=11 // pred_check
          %p149 = pneg %p102
        $region22: #{multi_head_attention.1} parent=11 // pred_check_branch
          %151 = sbr.rel (%p149) target = $region24
        $region23: #{multi_head_attention.1} parent=11 // pred_region
          _
        $region24: #{multi_head_attention.1} parent=11 // pred_fallthru
          _
      $region12: #{multi_head_attention.1} parent=5 // pred_fallthru
        _
      %p152 = scmp.lt.s32.totalorder %s13, 2
      // Predicated region
      $region25: #{multi_head_attention.1} parent=5 // pred_check
        %p153 = pneg %p152
      $region26: #{multi_head_attention.1} parent=5 // pred_check_branch
        %155 = sbr.rel (%p153) target = $region28
      $region27: #{multi_head_attention.1} parent=5 // pred_region
        // Predicated region
        $region29: #{multi_head_attention.1} parent=27 // pred_check
          %p156 = pneg %p33
        $region30: #{multi_head_attention.1} parent=27 // pred_check_branch
          %158 = sbr.rel (%p156) target = $region32
        $region31: #{multi_head_attention.1} parent=27 // pred_region
          %p159 = scmp.lt.s32.totalorder %s13, 1
          %s160 = scalar_select %p159, %s13, 1
          %s161 = smul.addr %s160, 2
          %s162 = smul.addr %s161, 4
          %s163 = scalar_lea.vmem %s0, %s162
        $region32: #{multi_head_attention.1} parent=27 // pred_fallthru
          _
      $region28: #{multi_head_attention.1} parent=5 // pred_fallthru
        _
      %p164 = scmp.le.s32.totalorder 1, %s13
      %p165 = scmp.lt.s32.totalorder %s13, 3
      %p166 = pnand %p164, %p165
      %p167 = pneg %p166
      // Predicated region
      $region33: #{multi_head_attention.1} parent=5 // pred_check
        _
      $region34: #{multi_head_attention.1} parent=5 // pred_check_branch
        %169 = sbr.rel (%p166) target = $region36
      $region35: #{multi_head_attention.1} parent=5 // pred_region
        %s170 = ssub.s32 %s13, 1
        %p171 = scmp.lt.s32.totalorder %s18, 1
        %s172 = scalar_select %p171, %s18, 1
        %s173 = smul.addr %s172, 2
        %s174 = smul.addr %s173, 4
        %s175 = scalar_lea.vmem %s0, %s174
        %p176 = pneg %p39
        %p177 = pneg %p36
        %p178 = pneg %p60
        %p179 = pneg %p57
        %p180 = pneg %p81
        %p181 = pneg %p78
        %p182 = pneg %p102
        %p183 = pneg %p99
        %p184 = pneg %p128
        %p185 = pneg %p125
        %s186 = sand.u32 %s115, 1
        %s187 = scalar_lea.sflag [#allocation4], %s186
        %s188 = sand.u32 %s115, 1
        %s189 = smul.addr %s188, 16
        %s190 = scalar_lea.vmem [#allocation3], %s189
        %p191 = scmp.lt.s32.totalorder %s18, 1
        %s192 = scalar_select %p191, %s18, 1
        %s193 = smul.addr %s192, 2
        %s194 = smul.addr %s193, 4
        %s195 = scalar_lea.vmem %s0, %s194
        %v197 = vld [vmem:[%s195] sm:$0xf]
        %v198 = vld [vmem:[%s195 + $0x4] sm:$0xf]
        %v199 = vld [vmem:[%s1] sm:$0xff]
        %v200 = vld [vmem:[%s1 + $0x8] sm:$0xf]
        %v201 = vld [vmem:[%s1 + $0xc] sm:$0xff]
        %v202 = vld [vmem:[%s1 + $0x14] sm:$0xf]
        %v203 = vld [vmem:[%s1 + $0x18] sm:$0xff]
        %v204 = vld [vmem:[%s1 + $0x20] sm:$0xf]
        %v205 = vld [vmem:[%s1 + $0x24] sm:$0xff]
        %v206 = vld [vmem:[%s1 + $0x2c] sm:$0xf]
        %v207 = vld [vmem:[%s1 + $0x30] sm:$0xff]
        %v208 = vld [vmem:[%s1 + $0x38] sm:$0xf]
        %v209 = vld [vmem:[%s1 + $0x3c] sm:$0xff]
        %v210 = vld [vmem:[%s1 + $0x44] sm:$0xf]
        %v211 = vld [vmem:[%s1 + $0x48] sm:$0xff]
        %v212 = vld [vmem:[%s1 + $0x50] sm:$0xf]
        %v213 = vld [vmem:[%s1 + $0x54] sm:$0xff]
        %v214 = vld [vmem:[%s1 + $0x5c] sm:$0xf]
        %v215 = vld [vmem:[%s1 + $0x60] sm:$0xff]
        %v216 = vld [vmem:[%s1 + $0x68] sm:$0xf]
        %v217 = vld [vmem:[%s1 + $0x6c] sm:$0xff]
        %v218 = vld [vmem:[%s1 + $0x74] sm:$0xf]
        %v219 = vld [vmem:[%s1 + $0x78] sm:$0xff]
        %v220 = vld [vmem:[%s1 + $0x80] sm:$0xf]
        %v221 = vld [vmem:[%s1 + $0x84] sm:$0xff]
        %v222 = vld [vmem:[%s1 + $0x8c] sm:$0xf]
        %v223 = vld [vmem:[%s1 + $0x90] sm:$0xff]
        %v224 = vld [vmem:[%s1 + $0x98] sm:$0xf]
        %v225 = vld [vmem:[%s1 + $0x9c] sm:$0xff]
        %v226 = vld [vmem:[%s1 + $0xa4] sm:$0xf]
        %v227 = vld [vmem:[%s1 + $0xa8] sm:$0xff]
        %v228 = vld [vmem:[%s1 + $0xb0] sm:$0xf]
        %v229 = vld [vmem:[%s1 + $0xb4] sm:$0xff]
        %v230 = vld [vmem:[%s1 + $0xbc] sm:$0xf]
        %v233 = vunpack.c.l.b16 %v197
        %v234 = vunpack.c.l.b16 %v198
        %v235 = vpack.c.b16 %v234, %v233
        %v269 = vunpack.c.l.b16 %v199
        %v270 = vunpack.c.h.b16 %v199
        %v271 = vunpack.c.l.b16 %v200
        %v272 = vunpack.c.l.b16 %v201
        %v273 = vunpack.c.h.b16 %v201
        %v274 = vunpack.c.l.b16 %v202
        %v275 = vunpack.c.l.b16 %v203
        %v276 = vunpack.c.h.b16 %v203
        %v277 = vunpack.c.l.b16 %v204
        %v278 = vunpack.c.l.b16 %v205
        %v279 = vunpack.c.h.b16 %v205
        %v280 = vunpack.c.l.b16 %v206
        %v281 = vunpack.c.l.b16 %v207
        %v282 = vunpack.c.h.b16 %v207
        %v283 = vunpack.c.l.b16 %v208
        %v284 = vunpack.c.l.b16 %v209
        %v285 = vunpack.c.h.b16 %v209
        %v286 = vunpack.c.l.b16 %v210
        %v287 = vunpack.c.l.b16 %v211
        %v288 = vunpack.c.h.b16 %v211
        %v289 = vunpack.c.l.b16 %v212
        %v290 = vunpack.c.l.b16 %v213
        %v291 = vunpack.c.h.b16 %v213
        %v292 = vunpack.c.l.b16 %v214
        %v293 = vunpack.c.l.b16 %v215
        %v294 = vunpack.c.h.b16 %v215
        %v295 = vunpack.c.l.b16 %v216
        %v296 = vunpack.c.l.b16 %v217
        %v297 = vunpack.c.h.b16 %v217
        %v298 = vunpack.c.l.b16 %v218
        %v299 = vunpack.c.l.b16 %v219
        %v300 = vunpack.c.h.b16 %v219
        %v301 = vunpack.c.l.b16 %v220
        %v302 = vunpack.c.l.b16 %v221
        %v303 = vunpack.c.h.b16 %v221
        %v304 = vunpack.c.l.b16 %v222
        %v305 = vunpack.c.l.b16 %v223
        %v306 = vunpack.c.h.b16 %v223
        %v307 = vunpack.c.l.b16 %v224
        %v308 = vunpack.c.l.b16 %v225
        %v309 = vunpack.c.h.b16 %v225
        %v310 = vunpack.c.l.b16 %v226
        %v311 = vunpack.c.l.b16 %v227
        %v312 = vunpack.c.h.b16 %v227
        %v313 = vunpack.c.l.b16 %v228
        %v314 = vunpack.c.l.b16 %v229
        %v315 = vunpack.c.h.b16 %v229
        %v316 = vunpack.c.l.b16 %v230
        %v317 = vpack.c.b16 %v272, %v269
        %v318 = vpack.c.b16 %v273, %v270
        %v319 = vpack.c.b16 %v274, %v271
        %v320 = vpack.c.b16 %v278, %v275
        %v321 = vpack.c.b16 %v279, %v276
        %v322 = vpack.c.b16 %v280, %v277
        %v323 = vpack.c.b16 %v284, %v281
        %v324 = vpack.c.b16 %v285, %v282
        %v325 = vpack.c.b16 %v286, %v283
        %v326 = vpack.c.b16 %v290, %v287
        %v327 = vpack.c.b16 %v291, %v288
        %v328 = vpack.c.b16 %v292, %v289
        %v329 = vpack.c.b16 %v296, %v293
        %v330 = vpack.c.b16 %v297, %v294
        %v331 = vpack.c.b16 %v298, %v295
        %v332 = vpack.c.b16 %v302, %v299
        %v333 = vpack.c.b16 %v303, %v300
        %v334 = vpack.c.b16 %v304, %v301
        %v335 = vpack.c.b16 %v308, %v305
        %v336 = vpack.c.b16 %v309, %v306
        %v337 = vpack.c.b16 %v310, %v307
        %v338 = vpack.c.b16 %v314, %v311
        %v339 = vpack.c.b16 %v315, %v312
        %v340 = vpack.c.b16 %v316, %v313
        %365 = vmatprep.subr.bf16.mxu0 %v318
        %366 = vmatpush1.bf16.msra.mxu0 %v317
        %367 = vmatprep.subr.bf16.mxu0 %v321
        %368 = vmatpush1.bf16.msra.mxu0 %v320
        %369 = vmatprep.subr.bf16.mxu0 %v324
        %370 = vmatpush1.bf16.msra.mxu0 %v323
        %371 = vmatprep.subr.bf16.mxu0 %v327
        %372 = vmatpush1.bf16.msra.mxu0 %v326
        %373 = vmatprep.subr.bf16.mxu0 %v330
        %374 = vmatpush1.bf16.msra.mxu0 %v329
        %375 = vmatprep.subr.bf16.mxu0 %v333
        %376 = vmatpush1.bf16.msra.mxu0 %v332
        %377 = vmatprep.subr.bf16.mxu0 %v336
        %378 = vmatpush1.bf16.msra.mxu0 %v335
        %379 = vmatprep.subr.bf16.mxu0 %v339
        %380 = vmatpush1.bf16.msra.mxu0 %v338
        %381 = vmatprep.subr.bf16.mxu0 0
        %382 = vmatpush1.bf16.msra.mxu0 0
        %383 = vmatprep.subr.bf16.mxu0 0
        %384 = vmatpush1.bf16.msra.mxu0 0
        %385 = vmatprep.subr.bf16.mxu0 0
        %386 = vmatpush1.bf16.msra.mxu0 0
        %387 = vmatprep.subr.bf16.mxu0 0
        %388 = vmatpush1.bf16.msra.mxu0 0
        %389 = vmatprep.subr.bf16.mxu0 0
        %390 = vmatpush1.bf16.msra.mxu0 0
        %391 = vmatprep.subr.bf16.mxu0 0
        %392 = vmatpush1.bf16.msra.mxu0 0
        %393 = vmatprep.subr.bf16.mxu0 0
        %394 = vmatpush1.bf16.msra.mxu0 0
        %395 = vmatprep.subr.bf16.mxu0 0
        %396 = vmatpush1.bf16.msra.mxu0 0
        %397 = vmatprep.mubr.bf16.mxu0 0
        %398 = vmatmul.mubr.bf16.gmra.mrb[0].mxu0 %v235
        %v399 = vpop.f32.mrb[0].mxu0
        %v400 = vadd.f32 0.0, %v399
        %v401 = vpop.f32.mrb[0].mxu0
        %v402 = vadd.f32 0.0, %v401
        %v403 = vpop.f32.mrb[0].mxu0
        %v404 = vadd.f32 0.0, %v403
        %v405 = vpop.f32.mrb[0].mxu0
        %v406 = vadd.f32 0.0, %v405
        %407 = vdwg.mxu0
        %408 = vmatprep.subr.bf16.mxu0 0
        %409 = vmatpush1.bf16.msra.mxu0 %v319
        %410 = vmatprep.subr.bf16.mxu0 0
        %411 = vmatpush1.bf16.msra.mxu0 %v322
        %412 = vmatprep.subr.bf16.mxu0 0
        %413 = vmatpush1.bf16.msra.mxu0 %v325
        %414 = vmatprep.subr.bf16.mxu0 0
        %415 = vmatpush1.bf16.msra.mxu0 %v328
        %416 = vmatprep.subr.bf16.mxu0 0
        %417 = vmatpush1.bf16.msra.mxu0 %v331
        %418 = vmatprep.subr.bf16.mxu0 0
        %419 = vmatpush1.bf16.msra.mxu0 %v334
        %420 = vmatprep.subr.bf16.mxu0 0
        %421 = vmatpush1.bf16.msra.mxu0 %v337
        %422 = vmatprep.subr.bf16.mxu0 0
        %423 = vmatpush1.bf16.msra.mxu0 %v340
        %424 = vmatprep.subr.bf16.mxu0 0
        %425 = vmatpush1.bf16.msra.mxu0 0
        %426 = vmatprep.subr.bf16.mxu0 0
        %427 = vmatpush1.bf16.msra.mxu0 0
        %428 = vmatprep.subr.bf16.mxu0 0
        %429 = vmatpush1.bf16.msra.mxu0 0
        %430 = vmatprep.subr.bf16.mxu0 0
        %431 = vmatpush1.bf16.msra.mxu0 0
        %432 = vmatprep.subr.bf16.mxu0 0
        %433 = vmatpush1.bf16.msra.mxu0 0
        %434 = vmatprep.subr.bf16.mxu0 0
        %435 = vmatpush1.bf16.msra.mxu0 0
        %436 = vmatprep.subr.bf16.mxu0 0
        %437 = vmatpush1.bf16.msra.mxu0 0
        %438 = vmatprep.subr.bf16.mxu0 0
        %439 = vmatpush1.bf16.msra.mxu0 0
        %440 = vmatprep.mubr.bf16.mxu0 0
        %441 = vmatmul.mubr.bf16.gmra.mrb[0].mxu0 %v235
        %v442 = vpop.f32.mrb[0].mxu0
        %v443 = vadd.f32 0.0, %v442
        %v444 = vpop.f32.mrb[0].mxu0
        %v445 = vpop.f32.mrb[0].mxu0
        %v446 = vadd.f32 0.0, %v445
        %v447 = vpop.f32.mrb[0].mxu0
        %448 = vdwg.mxu0
        %v449 = vpack.c.bf16 %v404, %v400
        %v450 = vpack.c.bf16 %v406, %v402
        %v451 = vpack.c.bf16 %v446, %v443
        %v452 = vlaneseq
        %v453 = vshrl.u32 %v452, 7
        %v454 = vadd.s32 %v453, 8
        %v455 = vlaneseq
        %v456 = vand.u32 %v455, 127
        %vm457 = vcmp.ge.s32.totalorder %v453, %v456
        %vm458 = vcmp.ge.s32.totalorder %v454, %v456
        %v459 = vsel %vm457, 0.0, -1e+30
        %v460 = vsel %vm458, 0.0, -1e+30
        %vm461 = vcmask 261120
        %v463 = vsel %vm461, %v449, 0
        %v466 = vsel %vm461, %v450, 0
        %468 = vmatprep.subr.bf16.mxu0 0
        %469 = vmatpush1.bf16.xpose.msra.mxu0 %v466
        %470 = vmatprep.subr.bf16.mxu0 0
        %471 = vmatpush1.bf16.xpose.msra.mxu0 0
        %472 = vmatprep.subr.bf16.mxu0 0
        %473 = vmatpush1.bf16.xpose.msra.mxu0 0
        %474 = vmatprep.subr.bf16.mxu0 0
        %475 = vmatpush1.bf16.xpose.msra.mxu0 0
        %476 = vmatprep.subr.bf16.mxu0 0
        %477 = vmatpush1.bf16.xpose.msra.mxu0 0
        %478 = vmatprep.subr.bf16.mxu0 0
        %479 = vmatpush1.bf16.xpose.msra.mxu0 0
        %480 = vmatprep.subr.bf16.mxu0 0
        %481 = vmatpush1.bf16.xpose.msra.mxu0 0
        %482 = vmatprep.subr.bf16.mxu0 0
        %483 = vmatpush1.bf16.xpose.msra.mxu0 0
        %484 = vmatprep.subr.bf16.mxu0 0
        %485 = vmatpush1.bf16.xpose.msra.mxu0 0
        %486 = vmatprep.subr.bf16.mxu0 0
        %487 = vmatpush1.bf16.xpose.msra.mxu0 0
        %488 = vmatprep.subr.bf16.mxu0 0
        %489 = vmatpush1.bf16.xpose.msra.mxu0 0
        %490 = vmatprep.subr.bf16.mxu0 0
        %491 = vmatpush1.bf16.xpose.msra.mxu0 0
        %492 = vmatprep.subr.bf16.mxu0 0
        %493 = vmatpush1.bf16.xpose.msra.mxu0 0
        %494 = vmatprep.subr.bf16.mxu0 0
        %495 = vmatpush1.bf16.xpose.msra.mxu0 0
        %496 = vmatprep.subr.bf16.mxu0 0
        %497 = vmatpush1.bf16.xpose.msra.mxu0 0
        %498 = vmatprep.subr.bf16.mxu0 0
        %499 = vmatpush1.bf16.xpose.msra.mxu0 0
        %500 = vmatprep.mubr.bf16.mxu0 0
        %501 = vmatmul.mubr.bf16.gmra.mrb[0].mxu0 %v463
        %v502 = vpop.f32.mrb[0].mxu0
        %v503 = vadd.f32 %v459, %v502
        %v504 = vpop.f32.mrb[0].mxu0
        %v505 = vpop.f32.mrb[0].mxu0
        %v506 = vadd.f32 %v460, %v505
        %v507 = vpop.f32.mrb[0].mxu0
        %508 = vdwg.mxu0
        %vm509 = vcmask 130048
        %v510 = vsel %vm509, %v503, -inf
        %511 = vmax.xlane.f32.xlu0 %v510
        %v512 = vpop.xlane.xlu0 %511
        %v513 = vsel %vm509, %v506, -inf
        %514 = vmax.xlane.f32.xlu0 %v513
        %v515 = vpop.xlane.xlu0 %514
        %v516 = vsub.f32 %v503, %v512
        %v517 = vsub.f32 %v506, %v515
        %v518 = vmul.f32 %v516, 1.442695
        %v519 = vpow.pop %v518
        %v520 = vmul.f32 %v517, 1.442695
        %v521 = vpow.pop %v520
        %v522 = vsel %vm509, %v519, 0.0
        %523 = vadd.xlane.f32.xlu0 %v522
        %v524 = vpop.xlane.xlu0 %523
        %v525 = vsel %vm509, %v521, 0.0
        %526 = vadd.xlane.f32.xlu0 %v525
        %v527 = vpop.xlane.xlu0 %526
        %v528 = vrcp.pop %v524
        %v529 = vmul.f32 %v519, %v528
        %v530 = vrcp.pop %v527
        %v531 = vmul.f32 %v521, %v530
        %v532 = vpack.c.bf16 %v531, %v529
        %v534 = vsel %vm509, %v532, 0
        %536 = vmatprep.subr.bf16.mxu0 0
        %537 = vmatpush1.bf16.msra.mxu0 %v451
        %538 = vmatprep.subr.bf16.mxu0 0
        %539 = vmatpush1.bf16.msra.mxu0 0
        %540 = vmatprep.subr.bf16.mxu0 0
        %541 = vmatpush1.bf16.msra.mxu0 0
        %542 = vmatprep.subr.bf16.mxu0 0
        %543 = vmatpush1.bf16.msra.mxu0 0
        %544 = vmatprep.subr.bf16.mxu0 0
        %545 = vmatpush1.bf16.msra.mxu0 0
        %546 = vmatprep.subr.bf16.mxu0 0
        %547 = vmatpush1.bf16.msra.mxu0 0
        %548 = vmatprep.subr.bf16.mxu0 0
        %549 = vmatpush1.bf16.msra.mxu0 0
        %550 = vmatprep.subr.bf16.mxu0 0
        %551 = vmatpush1.bf16.msra.mxu0 0
        %552 = vmatprep.subr.bf16.mxu0 0
        %553 = vmatpush1.bf16.msra.mxu0 0
        %554 = vmatprep.subr.bf16.mxu0 0
        %555 = vmatpush1.bf16.msra.mxu0 0
        %556 = vmatprep.subr.bf16.mxu0 0
        %557 = vmatpush1.bf16.msra.mxu0 0
        %558 = vmatprep.subr.bf16.mxu0 0
        %559 = vmatpush1.bf16.msra.mxu0 0
        %560 = vmatprep.subr.bf16.mxu0 0
        %561 = vmatpush1.bf16.msra.mxu0 0
        %562 = vmatprep.subr.bf16.mxu0 0
        %563 = vmatpush1.bf16.msra.mxu0 0
        %564 = vmatprep.subr.bf16.mxu0 0
        %565 = vmatpush1.bf16.msra.mxu0 0
        %566 = vmatprep.subr.bf16.mxu0 0
        %567 = vmatpush1.bf16.msra.mxu0 0
        %568 = vmatprep.mubr.bf16.mxu0 0
        %569 = vmatmul.mubr.bf16.gmra.mrb[0].mxu0 %v534
        %v570 = vpop.f32.mrb[0].mxu0
        %v571 = vadd.f32 0.0, %v570
        %v572 = vpop.f32.mrb[0].mxu0
        %v573 = vpop.f32.mrb[0].mxu0
        %v574 = vadd.f32 0.0, %v573
        %v575 = vpop.f32.mrb[0].mxu0
        %576 = vdwg.mxu0
        %v577 = vpack.c.bf16 %v574, %v571
        %578 = vst.msk [vmem:[#allocation2] sm:$0xff] %vm461, %v577
        %580 = vrot.lane.b32.xlu0 %v449, 96
        %v581 = vpop.permute.xlu0 %580
        %583 = vrot.lane.b32.xlu0 %v450, 96
        %v584 = vpop.permute.xlu0 %583
        %v586 = vsel %vm461, %v581, 0
        %v589 = vsel %vm461, %v584, 0
        %591 = vmatprep.subr.bf16.mxu0 0
        %592 = vmatpush1.bf16.xpose.msra.mxu0 %v589
        %593 = vmatprep.subr.bf16.mxu0 0
        %594 = vmatpush1.bf16.xpose.msra.mxu0 0
        %595 = vmatprep.subr.bf16.mxu0 0
        %596 = vmatpush1.bf16.xpose.msra.mxu0 0
        %597 = vmatprep.subr.bf16.mxu0 0
        %598 = vmatpush1.bf16.xpose.msra.mxu0 0
        %599 = vmatprep.subr.bf16.mxu0 0
        %600 = vmatpush1.bf16.xpose.msra.mxu0 0
        %601 = vmatprep.subr.bf16.mxu0 0
        %602 = vmatpush1.bf16.xpose.msra.mxu0 0
        %603 = vmatprep.subr.bf16.mxu0 0
        %604 = vmatpush1.bf16.xpose.msra.mxu0 0
        %605 = vmatprep.subr.bf16.mxu0 0
        %606 = vmatpush1.bf16.xpose.msra.mxu0 0
        %607 = vmatprep.subr.bf16.mxu0 0
        %608 = vmatpush1.bf16.xpose.msra.mxu0 0
        %609 = vmatprep.subr.bf16.mxu0 0
        %610 = vmatpush1.bf16.xpose.msra.mxu0 0
        %611 = vmatprep.subr.bf16.mxu0 0
        %612 = vmatpush1.bf16.xpose.msra.mxu0 0
        %613 = vmatprep.subr.bf16.mxu0 0
        %614 = vmatpush1.bf16.xpose.msra.mxu0 0
        %615 = vmatprep.subr.bf16.mxu0 0
        %616 = vmatpush1.bf16.xpose.msra.mxu0 0
        %617 = vmatprep.subr.bf16.mxu0 0
        %618 = vmatpush1.bf16.xpose.msra.mxu0 0
        %619 = vmatprep.subr.bf16.mxu0 0
        %620 = vmatpush1.bf16.xpose.msra.mxu0 0
        %621 = vmatprep.subr.bf16.mxu0 0
        %622 = vmatpush1.bf16.xpose.msra.mxu0 0
        %623 = vmatprep.mubr.bf16.mxu0 0
        %624 = vmatmul.mubr.bf16.gmra.mrb[0].mxu0 %v586
        %v625 = vpop.f32.mrb[0].mxu0
        %v626 = vadd.f32 %v459, %v625
        %v627 = vpop.f32.mrb[0].mxu0
        %v628 = vpop.f32.mrb[0].mxu0
        %v629 = vadd.f32 %v460, %v628
        %v630 = vpop.f32.mrb[0].mxu0
        %631 = vdwg.mxu0
        %v632 = vsel %vm509, %v626, -inf
        %633 = vmax.xlane.f32.xlu0 %v632
        %v634 = vpop.xlane.xlu0 %633
        %v635 = vsel %vm509, %v629, -inf
        %636 = vmax.xlane.f32.xlu0 %v635
        %v637 = vpop.xlane.xlu0 %636
        %v638 = vsub.f32 %v626, %v634
        %v639 = vsub.f32 %v629, %v637
        %v640 = vmul.f32 %v638, 1.442695
        %v641 = vpow.pop %v640
        %v642 = vmul.f32 %v639, 1.442695
        %v643 = vpow.pop %v642
        %v644 = vsel %vm509, %v641, 0.0
        %645 = vadd.xlane.f32.xlu0 %v644
        %v646 = vpop.xlane.xlu0 %645
        %v647 = vsel %vm509, %v643, 0.0
        %648 = vadd.xlane.f32.xlu0 %v647
        %v649 = vpop.xlane.xlu0 %648
        %v650 = vrcp.pop %v646
        %v651 = vmul.f32 %v641, %v650
        %v652 = vrcp.pop %v649
        %v653 = vmul.f32 %v643, %v652
        %v654 = vpack.c.bf16 %v653, %v651
        %656 = vrot.lane.b32.xlu0 %v451, 96
        %v657 = vpop.permute.xlu0 %656
        %v660 = vsel %vm509, %v654, 0
        %662 = vmatprep.subr.bf16.mxu0 0
        %663 = vmatpush1.bf16.msra.mxu0 %v657
        %664 = vmatprep.subr.bf16.mxu0 0
        %665 = vmatpush1.bf16.msra.mxu0 0
        %666 = vmatprep.subr.bf16.mxu0 0
        %667 = vmatpush1.bf16.msra.mxu0 0
        %668 = vmatprep.subr.bf16.mxu0 0
        %669 = vmatpush1.bf16.msra.mxu0 0
        %670 = vmatprep.subr.bf16.mxu0 0
        %671 = vmatpush1.bf16.msra.mxu0 0
        %672 = vmatprep.subr.bf16.mxu0 0
        %673 = vmatpush1.bf16.msra.mxu0 0
        %674 = vmatprep.subr.bf16.mxu0 0
        %675 = vmatpush1.bf16.msra.mxu0 0
        %676 = vmatprep.subr.bf16.mxu0 0
        %677 = vmatpush1.bf16.msra.mxu0 0
        %678 = vmatprep.subr.bf16.mxu0 0
        %679 = vmatpush1.bf16.msra.mxu0 0
        %680 = vmatprep.subr.bf16.mxu0 0
        %681 = vmatpush1.bf16.msra.mxu0 0
        %682 = vmatprep.subr.bf16.mxu0 0
        %683 = vmatpush1.bf16.msra.mxu0 0
        %684 = vmatprep.subr.bf16.mxu0 0
        %685 = vmatpush1.bf16.msra.mxu0 0
        %686 = vmatprep.subr.bf16.mxu0 0
        %687 = vmatpush1.bf16.msra.mxu0 0
        %688 = vmatprep.subr.bf16.mxu0 0
        %689 = vmatpush1.bf16.msra.mxu0 0
        %690 = vmatprep.subr.bf16.mxu0 0
        %691 = vmatpush1.bf16.msra.mxu0 0
        %692 = vmatprep.subr.bf16.mxu0 0
        %693 = vmatpush1.bf16.msra.mxu0 0
        %694 = vmatprep.mubr.bf16.mxu0 0
        %695 = vmatmul.mubr.bf16.gmra.mrb[0].mxu0 %v660
        %v696 = vpop.f32.mrb[0].mxu0
        %v697 = vadd.f32 0.0, %v696
        %v698 = vpop.f32.mrb[0].mxu0
        %v699 = vpop.f32.mrb[0].mxu0
        %v700 = vadd.f32 0.0, %v699
        %v701 = vpop.f32.mrb[0].mxu0
        %702 = vdwg.mxu0
        %v703 = vpack.c.bf16 %v700, %v697
        %705 = vrot.lane.b32.xlu0 %v703, 32
        %v706 = vpop.permute.xlu0 %705
        %vm708 = vcmask 523520
        %709 = vst.msk [vmem:[#allocation2] sm:$0xff] %vm708, %v706
        %710 = vrot.lane.b32.xlu0 %v449, 64
        %v711 = vpop.permute.xlu0 %710
        %712 = vrot.lane.b32.xlu0 %v450, 64
        %v713 = vpop.permute.xlu0 %712
        %v715 = vsel %vm461, %v711, 0
        %v718 = vsel %vm461, %v713, 0
        %720 = vmatprep.subr.bf16.mxu0 0
        %721 = vmatpush1.bf16.xpose.msra.mxu0 %v718
        %722 = vmatprep.subr.bf16.mxu0 0
        %723 = vmatpush1.bf16.xpose.msra.mxu0 0
        %724 = vmatprep.subr.bf16.mxu0 0
        %725 = vmatpush1.bf16.xpose.msra.mxu0 0
        %726 = vmatprep.subr.bf16.mxu0 0
        %727 = vmatpush1.bf16.xpose.msra.mxu0 0
        %728 = vmatprep.subr.bf16.mxu0 0
        %729 = vmatpush1.bf16.xpose.msra.mxu0 0
        %730 = vmatprep.subr.bf16.mxu0 0
        %731 = vmatpush1.bf16.xpose.msra.mxu0 0
        %732 = vmatprep.subr.bf16.mxu0 0
        %733 = vmatpush1.bf16.xpose.msra.mxu0 0
        %734 = vmatprep.subr.bf16.mxu0 0
        %735 = vmatpush1.bf16.xpose.msra.mxu0 0
        %736 = vmatprep.subr.bf16.mxu0 0
        %737 = vmatpush1.bf16.xpose.msra.mxu0 0
        %738 = vmatprep.subr.bf16.mxu0 0
        %739 = vmatpush1.bf16.xpose.msra.mxu0 0
        %740 = vmatprep.subr.bf16.mxu0 0
        %741 = vmatpush1.bf16.xpose.msra.mxu0 0
        %742 = vmatprep.subr.bf16.mxu0 0
        %743 = vmatpush1.bf16.xpose.msra.mxu0 0
        %744 = vmatprep.subr.bf16.mxu0 0
        %745 = vmatpush1.bf16.xpose.msra.mxu0 0
        %746 = vmatprep.subr.bf16.mxu0 0
        %747 = vmatpush1.bf16.xpose.msra.mxu0 0
        %748 = vmatprep.subr.bf16.mxu0 0
        %749 = vmatpush1.bf16.xpose.msra.mxu0 0
        %750 = vmatprep.subr.bf16.mxu0 0
        %751 = vmatpush1.bf16.xpose.msra.mxu0 0
        %752 = vmatprep.mubr.bf16.mxu0 0
        %753 = vmatmul.mubr.bf16.gmra.mrb[0].mxu0 %v715
        %v754 = vpop.f32.mrb[0].mxu0
        %v755 = vadd.f32 %v459, %v754
        %v756 = vpop.f32.mrb[0].mxu0
        %v757 = vpop.f32.mrb[0].mxu0
        %v758 = vadd.f32 %v460, %v757
        %v759 = vpop.f32.mrb[0].mxu0
        %760 = vdwg.mxu0
        %v761 = vsel %vm509, %v755, -inf
        %762 = vmax.xlane.f32.xlu0 %v761
        %v763 = vpop.xlane.xlu0 %762
        %v764 = vsel %vm509, %v758, -inf
        %765 = vmax.xlane.f32.xlu0 %v764
        %v766 = vpop.xlane.xlu0 %765
        %v767 = vsub.f32 %v755, %v763
        %v768 = vsub.f32 %v758, %v766
        %v769 = vmul.f32 %v767, 1.442695
        %v770 = vpow.pop %v769
        %v771 = vmul.f32 %v768, 1.442695
        %v772 = vpow.pop %v771
        %v773 = vsel %vm509, %v770, 0.0
        %774 = vadd.xlane.f32.xlu0 %v773
        %v775 = vpop.xlane.xlu0 %774
        %v776 = vsel %vm509, %v772, 0.0
        %777 = vadd.xlane.f32.xlu0 %v776
        %v778 = vpop.xlane.xlu0 %777
        %v779 = vrcp.pop %v775
        %v780 = vmul.f32 %v770, %v779
        %v781 = vrcp.pop %v778
        %v782 = vmul.f32 %v772, %v781
        %v783 = vpack.c.bf16 %v782, %v780
        %784 = vrot.lane.b32.xlu0 %v451, 64
        %v785 = vpop.permute.xlu0 %784
        %v788 = vsel %vm509, %v783, 0
        %790 = vmatprep.subr.bf16.mxu0 0
        %791 = vmatpush1.bf16.msra.mxu0 %v785
        %792 = vmatprep.subr.bf16.mxu0 0
        %793 = vmatpush1.bf16.msra.mxu0 0
        %794 = vmatprep.subr.bf16.mxu0 0
        %795 = vmatpush1.bf16.msra.mxu0 0
        %796 = vmatprep.subr.bf16.mxu0 0
        %797 = vmatpush1.bf16.msra.mxu0 0
        %798 = vmatprep.subr.bf16.mxu0 0
        %799 = vmatpush1.bf16.msra.mxu0 0
        %800 = vmatprep.subr.bf16.mxu0 0
        %801 = vmatpush1.bf16.msra.mxu0 0
        %802 = vmatprep.subr.bf16.mxu0 0
        %803 = vmatpush1.bf16.msra.mxu0 0
        %804 = vmatprep.subr.bf16.mxu0 0
        %805 = vmatpush1.bf16.msra.mxu0 0
        %806 = vmatprep.subr.bf16.mxu0 0
        %807 = vmatpush1.bf16.msra.mxu0 0
        %808 = vmatprep.subr.bf16.mxu0 0
        %809 = vmatpush1.bf16.msra.mxu0 0
        %810 = vmatprep.subr.bf16.mxu0 0
        %811 = vmatpush1.bf16.msra.mxu0 0
        %812 = vmatprep.subr.bf16.mxu0 0
        %813 = vmatpush1.bf16.msra.mxu0 0
        %814 = vmatprep.subr.bf16.mxu0 0
        %815 = vmatpush1.bf16.msra.mxu0 0
        %816 = vmatprep.subr.bf16.mxu0 0
        %817 = vmatpush1.bf16.msra.mxu0 0
        %818 = vmatprep.subr.bf16.mxu0 0
        %819 = vmatpush1.bf16.msra.mxu0 0
        %820 = vmatprep.subr.bf16.mxu0 0
        %821 = vmatpush1.bf16.msra.mxu0 0
        %822 = vmatprep.mubr.bf16.mxu0 0
        %823 = vmatmul.mubr.bf16.gmra.mrb[0].mxu0 %v788
        %v824 = vpop.f32.mrb[0].mxu0
        %v825 = vadd.f32 0.0, %v824
        %v826 = vpop.f32.mrb[0].mxu0
        %v827 = vpop.f32.mrb[0].mxu0
        %v828 = vadd.f32 0.0, %v827
        %v829 = vpop.f32.mrb[0].mxu0
        %830 = vdwg.mxu0
        %v831 = vpack.c.bf16 %v828, %v825
        %833 = vrot.lane.b32.xlu0 %v831, 64
        %v834 = vpop.permute.xlu0 %833
        %vm836 = vcmask 785920
        %837 = vst.msk [vmem:[#allocation2] sm:$0xff] %vm836, %v834
        %838 = vrot.lane.b32.xlu0 %v449, 32
        %v839 = vpop.permute.xlu0 %838
        %840 = vrot.lane.b32.xlu0 %v450, 32
        %v841 = vpop.permute.xlu0 %840
        %v843 = vsel %vm461, %v839, 0
        %v846 = vsel %vm461, %v841, 0
        %848 = vmatprep.subr.bf16.mxu0 0
        %849 = vmatpush1.bf16.xpose.msra.mxu0 %v846
        %850 = vmatprep.subr.bf16.mxu0 0
        %851 = vmatpush1.bf16.xpose.msra.mxu0 0
        %852 = vmatprep.subr.bf16.mxu0 0
        %853 = vmatpush1.bf16.xpose.msra.mxu0 0
        %854 = vmatprep.subr.bf16.mxu0 0
        %855 = vmatpush1.bf16.xpose.msra.mxu0 0
        %856 = vmatprep.subr.bf16.mxu0 0
        %857 = vmatpush1.bf16.xpose.msra.mxu0 0
        %858 = vmatprep.subr.bf16.mxu0 0
        %859 = vmatpush1.bf16.xpose.msra.mxu0 0
        %860 = vmatprep.subr.bf16.mxu0 0
        %861 = vmatpush1.bf16.xpose.msra.mxu0 0
        %862 = vmatprep.subr.bf16.mxu0 0
        %863 = vmatpush1.bf16.xpose.msra.mxu0 0
        %864 = vmatprep.subr.bf16.mxu0 0
        %865 = vmatpush1.bf16.xpose.msra.mxu0 0
        %866 = vmatprep.subr.bf16.mxu0 0
        %867 = vmatpush1.bf16.xpose.msra.mxu0 0
        %868 = vmatprep.subr.bf16.mxu0 0
        %869 = vmatpush1.bf16.xpose.msra.mxu0 0
        %870 = vmatprep.subr.bf16.mxu0 0
        %871 = vmatpush1.bf16.xpose.msra.mxu0 0
        %872 = vmatprep.subr.bf16.mxu0 0
        %873 = vmatpush1.bf16.xpose.msra.mxu0 0
        %874 = vmatprep.subr.bf16.mxu0 0
        %875 = vmatpush1.bf16.xpose.msra.mxu0 0
        %876 = vmatprep.subr.bf16.mxu0 0
        %877 = vmatpush1.bf16.xpose.msra.mxu0 0
        %878 = vmatprep.subr.bf16.mxu0 0
        %879 = vmatpush1.bf16.xpose.msra.mxu0 0
        %880 = vmatprep.mubr.bf16.mxu0 0
        %881 = vmatmul.mubr.bf16.gmra.mrb[0].mxu0 %v843
        %v882 = vpop.f32.mrb[0].mxu0
        %v883 = vadd.f32 %v459, %v882
        %v884 = vpop.f32.mrb[0].mxu0
        %v885 = vpop.f32.mrb[0].mxu0
        %v886 = vadd.f32 %v460, %v885
        %v887 = vpop.f32.mrb[0].mxu0
        %888 = vdwg.mxu0
        %v889 = vsel %vm509, %v883, -inf
        %890 = vmax.xlane.f32.xlu0 %v889
        %v891 = vpop.xlane.xlu0 %890
        %v892 = vsel %vm509, %v886, -inf
        %893 = vmax.xlane.f32.xlu0 %v892
        %v894 = vpop.xlane.xlu0 %893
        %v895 = vsub.f32 %v883, %v891
        %v896 = vsub.f32 %v886, %v894
        %v897 = vmul.f32 %v895, 1.442695
        %v898 = vpow.pop %v897
        %v899 = vmul.f32 %v896, 1.442695
        %v900 = vpow.pop %v899
        %v901 = vsel %vm509, %v898, 0.0
        %902 = vadd.xlane.f32.xlu0 %v901
        %v903 = vpop.xlane.xlu0 %902
        %v904 = vsel %vm509, %v900, 0.0
        %905 = vadd.xlane.f32.xlu0 %v904
        %v906 = vpop.xlane.xlu0 %905
        %v907 = vrcp.pop %v903
        %v908 = vmul.f32 %v898, %v907
        %v909 = vrcp.pop %v906
        %v910 = vmul.f32 %v900, %v909
        %v911 = vpack.c.bf16 %v910, %v908
        %912 = vrot.lane.b32.xlu0 %v451, 32
        %v913 = vpop.permute.xlu0 %912
        %v916 = vsel %vm509, %v911, 0
        %918 = vmatprep.subr.bf16.mxu0 0
        %919 = vmatpush1.bf16.msra.mxu0 %v913
        %920 = vmatprep.subr.bf16.mxu0 0
        %921 = vmatpush1.bf16.msra.mxu0 0
        %922 = vmatprep.subr.bf16.mxu0 0
        %923 = vmatpush1.bf16.msra.mxu0 0
        %924 = vmatprep.subr.bf16.mxu0 0
        %925 = vmatpush1.bf16.msra.mxu0 0
        %926 = vmatprep.subr.bf16.mxu0 0
        %927 = vmatpush1.bf16.msra.mxu0 0
        %928 = vmatprep.subr.bf16.mxu0 0
        %929 = vmatpush1.bf16.msra.mxu0 0
        %930 = vmatprep.subr.bf16.mxu0 0
        %931 = vmatpush1.bf16.msra.mxu0 0
        %932 = vmatprep.subr.bf16.mxu0 0
        %933 = vmatpush1.bf16.msra.mxu0 0
        %934 = vmatprep.subr.bf16.mxu0 0
        %935 = vmatpush1.bf16.msra.mxu0 0
        %936 = vmatprep.subr.bf16.mxu0 0
        %937 = vmatpush1.bf16.msra.mxu0 0
        %938 = vmatprep.subr.bf16.mxu0 0
        %939 = vmatpush1.bf16.msra.mxu0 0
        %940 = vmatprep.subr.bf16.mxu0 0
        %941 = vmatpush1.bf16.msra.mxu0 0
        %942 = vmatprep.subr.bf16.mxu0 0
        %943 = vmatpush1.bf16.msra.mxu0 0
        %944 = vmatprep.subr.bf16.mxu0 0
        %945 = vmatpush1.bf16.msra.mxu0 0
        %946 = vmatprep.subr.bf16.mxu0 0
        %947 = vmatpush1.bf16.msra.mxu0 0
        %948 = vmatprep.subr.bf16.mxu0 0
        %949 = vmatpush1.bf16.msra.mxu0 0
        %950 = vmatprep.mubr.bf16.mxu0 0
        %951 = vmatmul.mubr.bf16.gmra.mrb[0].mxu0 %v916
        %v952 = vpop.f32.mrb[0].mxu0
        %v953 = vadd.f32 0.0, %v952
        %v954 = vpop.f32.mrb[0].mxu0
        %v955 = vpop.f32.mrb[0].mxu0
        %v956 = vadd.f32 0.0, %v955
        %v957 = vpop.f32.mrb[0].mxu0
        %958 = vdwg.mxu0
        %v959 = vpack.c.bf16 %v956, %v953
        %961 = vrot.lane.b32.xlu0 %v959, 96
        %v962 = vpop.permute.xlu0 %961
        %vm964 = vcmask 1048320
        %965 = vst.msk [vmem:[#allocation2] sm:$0xff] %vm964, %v962
        %v966 = vld [vmem:[#allocation2] sm:$0xff]
        %v967 = vld [vmem:[%s2] sm:$0xf]
        %v968 = vld [vmem:[%s2 + $0x4] sm:$0xf]
        %v969 = vld [vmem:[%s2 + $0x8] sm:$0xf]
        %v970 = vld [vmem:[%s2 + $0xc] sm:$0xf]
        %v971 = vld [vmem:[%s2 + $0x10] sm:$0xf]
        %v972 = vld [vmem:[%s2 + $0x14] sm:$0xf]
        %v973 = vld [vmem:[%s2 + $0x18] sm:$0xf]
        %v974 = vld [vmem:[%s2 + $0x1c] sm:$0xf]
        %v975 = vld [vmem:[%s2 + $0x20] sm:$0xf]
        %v976 = vld [vmem:[%s2 + $0x24] sm:$0xf]
        %v977 = vld [vmem:[%s2 + $0x28] sm:$0xf]
        %v978 = vld [vmem:[%s2 + $0x2c] sm:$0xf]
        %v979 = vld [vmem:[%s2 + $0x30] sm:$0xf]
        %v980 = vld [vmem:[%s2 + $0x34] sm:$0xf]
        %v981 = vld [vmem:[%s2 + $0x38] sm:$0xf]
        %v982 = vld [vmem:[%s2 + $0x3c] sm:$0xf]
        %v983 = vld [vmem:[%s3] sm:$0x1]
        %v985 = vlaneseq
        %v986 = vshrl.u32 %v985, 7
        %v987 = vsub.s32 0, %v986
        %v988 = vrot.slane %v983, %v987
        %v1006 = vunpack.c.l.b16 %v967
        %v1007 = vunpack.c.l.b16 %v968
        %v1008 = vunpack.c.l.b16 %v969
        %v1009 = vunpack.c.l.b16 %v970
        %v1010 = vunpack.c.l.b16 %v971
        %v1011 = vunpack.c.l.b16 %v972
        %v1012 = vunpack.c.l.b16 %v973
        %v1013 = vunpack.c.l.b16 %v974
        %v1014 = vunpack.c.l.b16 %v975
        %v1015 = vunpack.c.l.b16 %v976
        %v1016 = vunpack.c.l.b16 %v977
        %v1017 = vunpack.c.l.b16 %v978
        %v1018 = vunpack.c.l.b16 %v979
        %v1019 = vunpack.c.l.b16 %v980
        %v1020 = vunpack.c.l.b16 %v981
        %v1021 = vunpack.c.l.b16 %v982
        %v1022 = vpack.c.b16 %v1007, %v1006
        %v1023 = vpack.c.b16 %v1009, %v1008
        %v1024 = vpack.c.b16 %v1011, %v1010
        %v1025 = vpack.c.b16 %v1013, %v1012
        %v1026 = vpack.c.b16 %v1015, %v1014
        %v1027 = vpack.c.b16 %v1017, %v1016
        %v1028 = vpack.c.b16 %v1019, %v1018
        %v1029 = vpack.c.b16 %v1021, %v1020
        %1038 = vmatprep.subr.bf16.mxu0 0
        %1039 = vmatpush1.bf16.msra.mxu0 %v1022
        %1040 = vmatprep.subr.bf16.mxu0 0
        %1041 = vmatpush1.bf16.msra.mxu0 %v1023
        %1042 = vmatprep.subr.bf16.mxu0 0
        %1043 = vmatpush1.bf16.msra.mxu0 %v1024
        %1044 = vmatprep.subr.bf16.mxu0 0
        %1045 = vmatpush1.bf16.msra.mxu0 %v1025
        %1046 = vmatprep.subr.bf16.mxu0 0
        %1047 = vmatpush1.bf16.msra.mxu0 %v1026
        %1048 = vmatprep.subr.bf16.mxu0 0
        %1049 = vmatpush1.bf16.msra.mxu0 %v1027
        %1050 = vmatprep.subr.bf16.mxu0 0
        %1051 = vmatpush1.bf16.msra.mxu0 %v1028
        %1052 = vmatprep.subr.bf16.mxu0 0
        %1053 = vmatpush1.bf16.msra.mxu0 %v1029
        %1054 = vmatprep.subr.bf16.mxu0 0
        %1055 = vmatpush1.bf16.msra.mxu0 0
        %1056 = vmatprep.subr.bf16.mxu0 0
        %1057 = vmatpush1.bf16.msra.mxu0 0
        %1058 = vmatprep.subr.bf16.mxu0 0
        %1059 = vmatpush1.bf16.msra.mxu0 0
        %1060 = vmatprep.subr.bf16.mxu0 0
        %1061 = vmatpush1.bf16.msra.mxu0 0
        %1062 = vmatprep.subr.bf16.mxu0 0
        %1063 = vmatpush1.bf16.msra.mxu0 0
        %1064 = vmatprep.subr.bf16.mxu0 0
        %1065 = vmatpush1.bf16.msra.mxu0 0
        %1066 = vmatprep.subr.bf16.mxu0 0
        %1067 = vmatpush1.bf16.msra.mxu0 0
        %1068 = vmatprep.subr.bf16.mxu0 0
        %1069 = vmatpush1.bf16.msra.mxu0 0
        %1070 = vmatprep.mubr.bf16.mxu0 0
        %1071 = vmatmul.mubr.bf16.gmra.mrb[0].mxu0 %v966
        %v1072 = vpop.f32.mrb[0].mxu0
        %v1073 = vadd.f32 %v988, %v1072
        %v1074 = vpop.f32.mrb[0].mxu0
        %v1075 = vpop.f32.mrb[0].mxu0
        %v1076 = vadd.f32 %v988, %v1075
        %v1077 = vpop.f32.mrb[0].mxu0
        %1078 = vdwg.mxu0
        %1079 = vst [vmem:[%s190] sm:$0xff] %v1073
        %1080 = vst [vmem:[%s190 + $0x8] sm:$0xff] %v1076
        %s1081 = sand.u32 %s115, 1
        %s1082 = scalar_lea.sflag [#allocation4], %s1081
        %s1083 = sand.u32 %s115, 1
        %s1084 = smul.addr %s1083, 16
        %s1085 = scalar_lea.vmem [#allocation3], %s1084
        // Predicated region
        $region37: #{multi_head_attention.1} parent=35 // pred_check
          %p1086 = pneg %p125
        $region38: #{multi_head_attention.1} parent=35 // pred_check_branch
          %1088 = sbr.rel (%p1086) target = $region40
        $region39: #{multi_head_attention.1} parent=35 // pred_region
          %s1090 = ssub.s32 256, 256
          %1091 = vsyncadd %s1082, %s1090
          %s1092 = smul.addr %s18, 2
          %s1093 = smul.addr %s1092, 128
          %s1094 = scalar_lea.hbm %s4, %s1093
          %s1095 = sshll.u32 %s1085, 4
          %s1096 = int_to_ptr.vmem [resolvable:$true] %s1095
          %1101 = dma.vmem_to_hbm [thread:$0]  %s1096, 256, %s1094, %s1082, 128, 128, 8
        $region40: #{multi_head_attention.1} parent=35 // pred_fallthru
          _
      $region36: #{multi_head_attention.1} parent=5 // pred_fallthru
        _
      %p1102 = scmp.le.s32.totalorder 2, %s13
      // Predicated region
      $region41: #{multi_head_attention.1} parent=5 // pred_check
        %p1103 = pneg %p1102
      $region42: #{multi_head_attention.1} parent=5 // pred_check_branch
        %1105 = sbr.rel (%p1103) target = $region44
      $region43: #{multi_head_attention.1} parent=5 // pred_region
        %s1106 = ssub.s32 %s13, 2
        // Predicated region
        $region45: #{multi_head_attention.1} parent=43 // pred_check
          %p1107 = pneg %p131
        $region46: #{multi_head_attention.1} parent=43 // pred_check_branch
          %1109 = sbr.rel (%p1107) target = $region48
        $region47: #{multi_head_attention.1} parent=43 // pred_region
          %s1110 = sand.u32 %s116, 1
          %s1111 = scalar_lea.sflag [#allocation4], %s1110
          %s1112 = sand.u32 %s116, 1
          %s1113 = smul.addr %s1112, 16
          %s1114 = scalar_lea.vmem [#allocation3], %s1113
          %1115 = dma.done %s1111, 256
        $region48: #{multi_head_attention.1} parent=43 // pred_fallthru
          _
      $region44: #{multi_head_attention.1} parent=5 // pred_fallthru
        _
    $region6: #{multi_head_attention.1} parent=1 // loop_footer
      %s17 = sadd.s32 1, %s13
    $region7: #{multi_head_attention.1} parent=1 // loop_footer_branch
      %12 = sbr.rel target = $region3
    $region8: #{multi_head_attention.1} parent=1 // loop_exit
      _
    %1116 = vsyncpa [#allocation4], 1
    %s1117 = scalar_lea.sflag [#allocation4], 1
    %1118 = vsyncpa %s1117, 1

</llo_original>
